<compile_context>
chip_gen: v6e
topology: v6e:2x2x1
jax: 0.10.0
libtpu: 0.0.40
codegen_flags: <defaults>
</compile_context>

<pallas_src>
import jax
import jax.numpy as jnp
from jax.experimental import pallas as pl
from jax.experimental.pallas import tpu as pltpu

BN_EPS = 1e-5                       # PyTorch BatchNorm2d default eps
_VMEM_LIMIT = 32 * 1024 * 1024      # scoped VMEM (safe on v5e/v6e/v7x)
_TILE_BUDGET = 16 * 1024 * 1024     # double-buffered x/out tile budget


def _choose_tiles(n, hw, c, cout, x_itemsize, out_itemsize):
    """Pick (batch-pack Nb, lane tile T).  T is a multiple of 128 dividing hw
    (or hw itself), sized against a double-buffered VMEM budget.  For short
    spatial tiles, pack several batch elements per grid step."""
    if hw % 128 == 0:
        bytes_per_lane = 2 * (x_itemsize * c + out_itemsize * cout)  # 2 bufs
        cap = max(128, _TILE_BUDGET // max(bytes_per_lane, 1))
        tile = min((cap // 128) * 128, hw, 8192)
        tile = max(tile, 128)
        while hw % tile:
            tile -= 128
    else:
        tile = hw   # block last dim must then equal the full array dim
    nb = 1
    if tile < 512:  # small spatial: amortize per-grid-step overhead
        nb = min(n, max(1, 512 // tile), 8)
        while n % nb:
            nb -= 1
    return nb, tile


# ---------------------------------------------------------------------------
# Pass 1: per-channel sum / sum-of-squares of y = conv1x1(x)  (BN statistics)
#   outputs are per-batch-group partials -> batch axis is megacore-parallel.
# ---------------------------------------------------------------------------

def _stats_kernel(x_ref, wt_ref, sum_ref, ssq_ref):
    # x: (Nb, C, T) compute dtype, wt: (Cout, C), sum/ssq: (1, Cout, 1) f32
    @pl.when(pl.program_id(1) == 0)
    def _init():
        sum_ref[...] = jnp.zeros_like(sum_ref)
        ssq_ref[...] = jnp.zeros_like(ssq_ref)

    w = wt_ref[...]
    nb = x_ref.shape[0]
    s = jnp.zeros(sum_ref.shape, jnp.float32)
    q = jnp.zeros(ssq_ref.shape, jnp.float32)
    for b in range(nb):                                   # static unroll
        y = jnp.dot(w, x_ref[b], preferred_element_type=jnp.float32)
        s = s + jnp.sum(y, axis=1, keepdims=True)[None]
        q = q + jnp.sum(y * y, axis=1, keepdims=True)[None]
    sum_ref[...] += s
    ssq_ref[...] += q


def _bn_stats(xm, wt, nb, tile):
    n, c, hw = xm.shape
    cout = int(wt.shape[0])
    groups = n // nb
    grid = (groups, hw // tile)
    x_spec = pl.BlockSpec((nb, c, tile), lambda i, t: (i, 0, t))
    w_spec = pl.BlockSpec((cout, c), lambda i, t: (0, 0))
    stat_spec = pl.BlockSpec((1, cout, 1), lambda i, t: (i, 0, 0))
    x_bytes = int(xm.size) * xm.dtype.itemsize
    flops = 2 * n * hw * c * cout + 4 * n * hw * cout
    bytes_acc = x_bytes + int(wt.size) * wt.dtype.itemsize + 8 * groups * cout
    return pl.pallas_call(
        _stats_kernel,
        grid=grid,
        in_specs=[x_spec, w_spec],
        out_specs=(stat_spec, stat_spec),
        out_shape=(jax.ShapeDtypeStruct((groups, cout, 1), jnp.float32),) * 2,
        compiler_params=pltpu.CompilerParams(
            dimension_semantics=("parallel", "arbitrary"),
            vmem_limit_bytes=_VMEM_LIMIT),
        cost_estimate=pl.CostEstimate(flops=flops, transcendentals=0,
                                      bytes_accessed=bytes_acc),
    )(xm, wt)


# ---------------------------------------------------------------------------
# Pass 2: out = scale * conv1x1(x) + shift   (BN applied; scale/shift in f32)
# ---------------------------------------------------------------------------

def _apply_kernel(x_ref, wt_ref, scale_ref, shift_ref, o_ref):
    # x: (Nb, C, T), wt: (Cout, C), scale/shift: (Cout, 1) f32, o: (Nb, Cout, T)
    w = wt_ref[...]
    sc = scale_ref[...]
    sh = shift_ref[...]
    nb = x_ref.shape[0]
    for b in range(nb):                                   # static unroll
        y = jnp.dot(w, x_ref[b], preferred_element_type=jnp.float32)
        o_ref[b] = (y * sc + sh).astype(o_ref.dtype)


def _bn_apply(xm, wt, scale, shift, nb, tile, out_dtype):
    n, c, hw = xm.shape
    cout = int(wt.shape[0])
    grid = (n // nb, hw // tile)
    x_spec = pl.BlockSpec((nb, c, tile), lambda i, t: (i, 0, t))
    w_spec = pl.BlockSpec((cout, c), lambda i, t: (0, 0))
    ss_spec = pl.BlockSpec((cout, 1), lambda i, t: (0, 0))
    o_spec = pl.BlockSpec((nb, cout, tile), lambda i, t: (i, 0, t))
    flops = 2 * n * hw * c * cout + 2 * n * hw * cout
    bytes_acc = (int(xm.size) * xm.dtype.itemsize
                 + n * cout * hw * jnp.dtype(out_dtype).itemsize)
    return pl.pallas_call(
        _apply_kernel,
        grid=grid,
        in_specs=[x_spec, w_spec, ss_spec, ss_spec],
        out_specs=o_spec,
        out_shape=jax.ShapeDtypeStruct((n, cout, hw), out_dtype),
        compiler_params=pltpu.CompilerParams(
            dimension_semantics=("parallel", "parallel"),
            vmem_limit_bytes=_VMEM_LIMIT),
        cost_estimate=pl.CostEstimate(flops=flops, transcendentals=0,
                                      bytes_accessed=bytes_acc),
    )(xm, wt, scale, shift)


# ---------------------------------------------------------------------------
# Module wrapper / params / reference
# ---------------------------------------------------------------------------

def init_params(key, in_planes, out_planes, stride=2):
    assert out_planes % 2 == 0, "Need even number of filters."
    k1, k2 = jax.random.split(key, 2)
    scale = 1.0 / jnp.sqrt(in_planes)  # ~ PyTorch conv default init range
    params = {}
    if stride == 1:
        params["w"] = jax.random.uniform(
            k1, (in_planes, out_planes), jnp.float32, -scale, scale)
    else:
        half = out_planes // 2
        params["w1"] = jax.random.uniform(
            k1, (in_planes, half), jnp.float32, -scale, scale)
        params["w2"] = jax.random.uniform(
            k2, (in_planes, half), jnp.float32, -scale, scale)
    params["gamma"] = jnp.ones((1, out_planes), jnp.float32)   # BN weight=1
    params["beta"] = jnp.zeros((1, out_planes), jnp.float32)   # BN bias=0
    return params


def factorized_reduction(x, params, stride=2, compute_dtype=jnp.bfloat16):
    """x: NCHW float32 -> NCHW float32, matching the PyTorch forward
    (training-mode batch statistics, track_running_stats=False).
    compute_dtype: storage/MXU dtype for activations & weights (BN math f32)."""
    N, Cin, H, W = x.shape

    if stride == 1:
        Ho, Wo = H, W
        xm = x.reshape(N, Cin, Ho * Wo)                 # free reshape
        wt = params["w"].T                               # (Cout, Cin)
    else:
        if H % 2 == 0 and W % 2 == 0:
            # path1: AvgPool2d(1,2) == even subsample; path2 (pad+shift+pool)
            # == odd subsample.  No padded copy needed for even H/W.
            x1 = x[:, :, ::2, ::2]
            x2 = x[:, :, 1::2, 1::2]
        else:
            x1 = x[:, :, ::stride, ::stride]
            xp = jnp.pad(x, ((0, 0), (0, 0), (0, 1), (0, 1)))[:, :, 1:, 1:]
            x2 = xp[:, :, ::stride, ::stride]
        Ho, Wo = x1.shape[2], x1.shape[3]
        # Fuse the two halves: one [2*Cin, T] operand + block-diagonal
        # [Cout, 2*Cin] weight -> single matmul, unmasked full-channel stores.
        xm = jnp.concatenate([x1, x2], axis=1).reshape(N, 2 * Cin, Ho * Wo)
        w1t, w2t = params["w1"].T, params["w2"].T        # each (Cout//2, Cin)
        z = jnp.zeros_like(w1t)
        wt = jnp.concatenate(
            [jnp.concatenate([w1t, z], axis=1),
             jnp.concatenate([z, w2t], axis=1)], axis=0)  # (Cout, 2*Cin)

    HW = Ho * Wo
    C = int(xm.shape[1])
    Cout = int(wt.shape[0])

    xm_c = xm.astype(compute_dtype)
    wt_c = wt.astype(compute_dtype)

    nb, tile = _choose_tiles(N, HW, C, Cout,
                             jnp.dtype(compute_dtype).itemsize,
                             jnp.dtype(x.dtype).itemsize)

    # Pass 1: per-batch-group partial sum / sum-of-squares of conv output.
    sums, ssq = _bn_stats(xm_c, wt_c, nb, tile)          # (groups, Cout, 1)
    sum_tot = jnp.sum(sums, axis=(0, 2))                 # (Cout,)  f32
    ssq_tot = jnp.sum(ssq, axis=(0, 2))

    # Tiny per-channel BN math in plain JAX (Cout scalars, f32 throughout).
    m = jnp.float32(N * HW)
    mean = sum_tot / m
    var = jnp.maximum(ssq_tot / m - mean * mean, 0.0)    # clamp for safety
    inv = jax.lax.rsqrt(var + BN_EPS)
    gamma = params["gamma"].reshape(Cout)
    beta = params["beta"].reshape(Cout)
    scale = (gamma * inv).reshape(Cout, 1).astype(jnp.float32)
    shift = (beta - mean * gamma * inv).reshape(Cout, 1).astype(jnp.float32)

    # Pass 2: recompute conv (cheap: C small), apply f32 scale/shift in-kernel.
    out = _bn_apply(xm_c, wt_c, scale, shift, nb, tile, x.dtype)
    return out.reshape(N, Cout, Ho, Wo)


def factorized_reduction_ref(x, params, stride=2):
    """Pure-JAX f32 reference of the PyTorch forward (correctness check)."""
    def bn(y):
        mean = y.mean(axis=(0, 2, 3), keepdims=True)
        var = ((y - mean) ** 2).mean(axis=(0, 2, 3), keepdims=True)  # biased
        g = params["gamma"].reshape(1, -1, 1, 1)
        b = params["beta"].reshape(1, -1, 1, 1)
        return (y - mean) / jnp.sqrt(var + BN_EPS) * g + b

    def conv1x1(y, w):
        return jnp.einsum("nchw,cd->ndhw", y, w)

    if stride == 1:
        return bn(conv1x1(x, params["w"]))
    x1 = x[:, :, ::stride, ::stride]
    x2 = jnp.pad(x, ((0, 0), (0, 0), (0, 1), (0, 1)))[:, :, 1:, 1:]
    x2 = x2[:, :, ::stride, ::stride]
    y = jnp.concatenate(
        [conv1x1(x1, params["w1"]), conv1x1(x2, params["w2"])], axis=1)
    return bn(y)


if __name__ == "__main__":
    key = jax.random.PRNGKey(0)
    kx, kp1, kp2 = jax.random.split(key, 3)

    N, Cin, H, W = 2, 4, 16, 16
    out_planes = 8
    x = jax.random.normal(kx, (N, Cin, H, W), jnp.float32)

    p2 = init_params(kp1, Cin, out_planes, stride=2)   # factorized reduction
    p1 = init_params(kp2, Cin, out_planes, stride=1)   # 1x1 conv + BN

    # f32 compute path: tight check against the pure-JAX reference.
    for stride, p, oshape in ((2, p2, (N, out_planes, H // 2, W // 2)),
                              (1, p1, (N, out_planes, H, W))):
        y = jax.block_until_ready(
            factorized_reduction(x, p, stride=stride,
                                 compute_dtype=jnp.float32))
        r = factorized_reduction_ref(x, p, stride=stride)
        assert y.shape == oshape
        assert jnp.allclose(y, r, atol=5e-4, rtol=5e-4), \
            float(jnp.max(jnp.abs(y - r)))

    # bf16 compute path (default / production): loose tolerance.
    for stride, p in ((2, p2), (1, p1)):
        y = jax.block_until_ready(factorized_reduction(x, p, stride=stride))
        r = factorized_reduction_ref(x, p, stride=stride)
        assert jnp.allclose(y, r, atol=5e-2, rtol=5e-2), \
            float(jnp.max(jnp.abs(y - r)))

    print("KERNEL_OK")
</pallas_src>

<mosaic_0001>
module attributes {stable_mosaic.version = 11 : i64} {
  func.func @_stats_kernel(%arg0: i32, %arg1: i32, %arg2: memref<2x8x64xf32, #tpu.memory_space<vmem>>, %arg3: memref<8x8xf32, #tpu.memory_space<vmem>>, %arg4: memref<1x8x1xf32, #tpu.memory_space<vmem>>, %arg5: memref<1x8x1xf32, #tpu.memory_space<vmem>>) attributes {dimension_semantics = [#tpu.dimension_semantics<parallel>, #tpu.dimension_semantics<arbitrary>], iteration_bounds = array<i64: 1, 1>, scalar_prefetch = 0 : i64, scratch_operands = 0 : i64, tpu.core_type = #tpu.core_type<tc>, window_params = [{transform_indices = @transform_0, window_bounds = array<i64: 2, 8, 64>}, {pipeline_mode = #tpu.pipeline_mode<synchronous>, transform_indices = @transform_1, window_bounds = array<i64: 8, 8>}, {transform_indices = @transform_2, window_bounds = array<i64: 1, 8, 1>}, {transform_indices = @transform_3, window_bounds = array<i64: 1, 8, 1>}]} {
    %c0_i32 = arith.constant 0 : i32
    %0 = arith.cmpi eq, %arg1, %c0_i32 : i32
    %1 = arith.extui %0 : i1 to i32
    %c0_i32_0 = arith.constant 0 : i32
    %2 = arith.cmpi ne, %1, %c0_i32_0 : i32
    scf.if %2 {
      %cst_26 = arith.constant 0.000000e+00 : f32
      %36 = vector.broadcast %cst_26 : f32 to vector<1x8x1xf32>
      %c0_27 = arith.constant 0 : index
      %c0_28 = arith.constant 0 : index
      %c0_29 = arith.constant 0 : index
      %37 = vector.load %arg4[%c0_27, %c0_28, %c0_29] : memref<1x8x1xf32, #tpu.memory_space<vmem>>, vector<1x8x1xf32>
      tpu.vector_store %arg4[%c0_27, %c0_28, %c0_29], %36 {strides = array<i32>} : memref<1x8x1xf32, #tpu.memory_space<vmem>>, vector<1x8x1xf32>,
      %cst_30 = arith.constant 0.000000e+00 : f32
      %38 = vector.broadcast %cst_30 : f32 to vector<1x8x1xf32>
      %c0_31 = arith.constant 0 : index
      %c0_32 = arith.constant 0 : index
      %c0_33 = arith.constant 0 : index
      %39 = vector.load %arg5[%c0_31, %c0_32, %c0_33] : memref<1x8x1xf32, #tpu.memory_space<vmem>>, vector<1x8x1xf32>
      tpu.vector_store %arg5[%c0_31, %c0_32, %c0_33], %38 {strides = array<i32>} : memref<1x8x1xf32, #tpu.memory_space<vmem>>, vector<1x8x1xf32>,
    } else {
    }
    %c0 = arith.constant 0 : index
    %c0_1 = arith.constant 0 : index
    %3 = vector.load %arg3[%c0, %c0_1] : memref<8x8xf32, #tpu.memory_space<vmem>>, vector<8x8xf32>
    %cst = arith.constant 0.000000e+00 : f32
    %4 = vector.broadcast %cst : f32 to vector<1x8x1xf32>
    %cst_2 = arith.constant 0.000000e+00 : f32
    %5 = vector.broadcast %cst_2 : f32 to vector<1x8x1xf32>
    %c0_3 = arith.constant 0 : index
    %c0_4 = arith.constant 0 : index
    %c0_5 = arith.constant 0 : index
    %6 = vector.load %arg2[%c0_3, %c0_4, %c0_5] : memref<2x8x64xf32, #tpu.memory_space<vmem>>, vector<1x8x64xf32>
    %7 = vector.shape_cast %6 : vector<1x8x64xf32> to vector<8x64xf32>
    %cst_6 = arith.constant dense<0.000000e+00> : vector<8x64xf32>
    %8 = tpu.matmul %3, %7, %cst_6 {dimension_numbers = #tpu.dot_dimension_numbers<[1], [0], [0], [1], [0, 0, 1, 1], [], []>} : vector<8x8xf32>, vector<8x64xf32>, vector<8x64xf32> -> vector<8x64xf32>
    %cst_7 = arith.constant dense<0.000000e+00> : vector<8xf32>
    %9 = vector.multi_reduction <add>, %8, %cst_7 [1] : vector<8x64xf32> to vector<8xf32>
    %10 = vector.shape_cast %9 : vector<8xf32> to vector<8x1xf32>
    %11 = vector.shape_cast %10 : vector<8x1xf32> to vector<1x8x1xf32>
    %12 = arith.addf %4, %11 : vector<1x8x1xf32>
    %13 = arith.mulf %8, %8 : vector<8x64xf32>
    %cst_8 = arith.constant dense<0.000000e+00> : vector<8xf32>
    %14 = vector.multi_reduction <add>, %13, %cst_8 [1] : vector<8x64xf32> to vector<8xf32>
    %15 = vector.shape_cast %14 : vector<8xf32> to vector<8x1xf32>
    %16 = vector.shape_cast %15 : vector<8x1xf32> to vector<1x8x1xf32>
    %17 = arith.addf %5, %16 : vector<1x8x1xf32>
    %c1 = arith.constant 1 : index
    %c0_9 = arith.constant 0 : index
    %c0_10 = arith.constant 0 : index
    %18 = vector.load %arg2[%c1, %c0_9, %c0_10] : memref<2x8x64xf32, #tpu.memory_space<vmem>>, vector<1x8x64xf32>
    %19 = vector.shape_cast %18 : vector<1x8x64xf32> to vector<8x64xf32>
    %cst_11 = arith.constant dense<0.000000e+00> : vector<8x64xf32>
    %20 = tpu.matmul %3, %19, %cst_11 {dimension_numbers = #tpu.dot_dimension_numbers<[1], [0], [0], [1], [0, 0, 1, 1], [], []>} : vector<8x8xf32>, vector<8x64xf32>, vector<8x64xf32> -> vector<8x64xf32>
    %cst_12 = arith.constant dense<0.000000e+00> : vector<8xf32>
    %21 = vector.multi_reduction <add>, %20, %cst_12 [1] : vector<8x64xf32> to vector<8xf32>
    %22 = vector.shape_cast %21 : vector<8xf32> to vector<8x1xf32>
    %23 = vector.shape_cast %22 : vector<8x1xf32> to vector<1x8x1xf32>
    %24 = arith.addf %12, %23 : vector<1x8x1xf32>
    %25 = arith.mulf %20, %20 : vector<8x64xf32>
    %cst_13 = arith.constant dense<0.000000e+00> : vector<8xf32>
    %26 = vector.multi_reduction <add>, %25, %cst_13 [1] : vector<8x64xf32> to vector<8xf32>
    %27 = vector.shape_cast %26 : vector<8xf32> to vector<8x1xf32>
    %28 = vector.shape_cast %27 : vector<8x1xf32> to vector<1x8x1xf32>
    %29 = arith.addf %17, %28 : vector<1x8x1xf32>
    %c0_14 = arith.constant 0 : index
    %c0_15 = arith.constant 0 : index
    %c0_16 = arith.constant 0 : index
    %30 = vector.load %arg4[%c0_14, %c0_15, %c0_16] : memref<1x8x1xf32, #tpu.memory_space<vmem>>, vector<1x8x1xf32>
    %31 = arith.addf %30, %24 : vector<1x8x1xf32>
    %c0_17 = arith.constant 0 : index
    %c0_18 = arith.constant 0 : index
    %c0_19 = arith.constant 0 : index
    %32 = vector.load %arg4[%c0_17, %c0_18, %c0_19] : memref<1x8x1xf32, #tpu.memory_space<vmem>>, vector<1x8x1xf32>
    tpu.vector_store %arg4[%c0_17, %c0_18, %c0_19], %31 {strides = array<i32>} : memref<1x8x1xf32, #tpu.memory_space<vmem>>, vector<1x8x1xf32>,
    %c0_20 = arith.constant 0 : index
    %c0_21 = arith.constant 0 : index
    %c0_22 = arith.constant 0 : index
    %33 = vector.load %arg5[%c0_20, %c0_21, %c0_22] : memref<1x8x1xf32, #tpu.memory_space<vmem>>, vector<1x8x1xf32>
    %34 = arith.addf %33, %29 : vector<1x8x1xf32>
    %c0_23 = arith.constant 0 : index
    %c0_24 = arith.constant 0 : index
    %c0_25 = arith.constant 0 : index
    %35 = vector.load %arg5[%c0_23, %c0_24, %c0_25] : memref<1x8x1xf32, #tpu.memory_space<vmem>>, vector<1x8x1xf32>
    tpu.vector_store %arg5[%c0_23, %c0_24, %c0_25], %34 {strides = array<i32>} : memref<1x8x1xf32, #tpu.memory_space<vmem>>, vector<1x8x1xf32>,
    return
  }
  func.func @transform_0(%arg0: i32, %arg1: i32) -> (i32, i32, i32) {
    %c0_i32 = arith.constant 0 : i32
    %c0_i32_0 = arith.constant 0 : i32
    return %arg0, %c0_i32, %arg1 : i32, i32, i32
  }
  func.func @transform_1(%arg0: i32, %arg1: i32) -> (i32, i32) {
    %c0_i32 = arith.constant 0 : i32
    %c0_i32_0 = arith.constant 0 : i32
    %c0_i32_1 = arith.constant 0 : i32
    return %c0_i32, %c0_i32_0 : i32, i32
  }
  func.func @transform_2(%arg0: i32, %arg1: i32) -> (i32, i32, i32) {
    %c0_i32 = arith.constant 0 : i32
    %c0_i32_0 = arith.constant 0 : i32
    %c0_i32_1 = arith.constant 0 : i32
    return %arg0, %c0_i32, %c0_i32_0 : i32, i32, i32
  }
  func.func @transform_3(%arg0: i32, %arg1: i32) -> (i32, i32, i32) {
    %c0_i32 = arith.constant 0 : i32
    %c0_i32_0 = arith.constant 0 : i32
    %c0_i32_1 = arith.constant 0 : i32
    return %arg0, %c0_i32, %c0_i32_0 : i32, i32, i32
  }
}

</mosaic_0001>

<llo_original>
// kernel: tpu_custom_call.1
$region0: #{tpu_custom_call.1}
  #allocation0 [shape = 'u32[]', space=smem, size = 0x4, offset = 0x4, fixed_abs, tag = 'smem constant byte address 0x4 - core index']
  #allocation1 [shape = 'u32[144,128]{1,0:T(1,128)}', space=vmem, size = 0x12000, scoped, tag = 'internal scratch']
  %s0 = inlined_call_operand.hbm [shape: f32[2,8,64], index: 0, kind: input, shape index: {}]
  %s1 = inlined_call_operand.hbm [shape: f32[8,8], index: 1, kind: input, shape index: {}]
  %s2 = inlined_call_operand.vmem [shape: f32[1,8,1], index: 2, kind: output, shape index: {0}]
  %s3 = inlined_call_operand.vmem [shape: f32[1,8,1], index: 3, kind: output, shape index: {1}]
  %4 = xla_tuple %s2, %s3
  %s5 = sld [smem:[#allocation0]]
  $region38: #{tpu_custom_call.1} parent=0
    _
  %s7 = ssub.s32 1, %s5
  %s8 = scalar_select 0, %s7, %s5
  $region1: #{tpu_custom_call.1} parent=0
    #allocation2 [shape = 'u8[8192]{0}', space=vmem, size = 0x2000, scoped, tag = 'input window, operand 0, single buffered']
    #allocation3 [shape = 's32[1]{0}', space=sflag, size = 0x4, scoped, tag = 'scoped memory for tpu_custom_call.1']
    #allocation4 [shape = 'u8[4096]{0}', space=vmem, size = 0x1000, scoped, tag = 'input window, operand 1, single buffered']
    #allocation5 [shape = 's32[1]{0}', space=sflag, size = 0x4, scoped, tag = 'scoped memory for tpu_custom_call.1']
    %9 = vsyncpa [#allocation3], 0
    %10 = vsyncpa [#allocation5], 0
    // Predicated region
    $region2: #{tpu_custom_call.1} parent=1 // pred_check
      _
    $region3: #{tpu_custom_call.1} parent=1 // pred_check_branch
      %12 = sbr.rel (0) target = $region5
    $region4: #{tpu_custom_call.1} parent=1 // pred_region
      %s14 = ssub.s32 256, 256
      %15 = vsyncadd [#allocation3], %s14
      %s16 = sshll.u32 [#allocation2], 4
      %s17 = int_to_ptr.vmem [resolvable:$true] %s16
      %22 = dma.hbm_to_vmem [thread:$0]  %s0, 256, %s17, [#allocation3], 128, 128, 8
    $region5: #{tpu_custom_call.1} parent=1 // pred_fallthru
      _
    // Predicated region
    $region6: #{tpu_custom_call.1} parent=1 // pred_check
      _
    $region7: #{tpu_custom_call.1} parent=1 // pred_check_branch
      %24 = sbr.rel (0) target = $region9
    $region8: #{tpu_custom_call.1} parent=1 // pred_region
      %s26 = ssub.s32 128, 128
      %27 = vsyncadd [#allocation5], %s26
      %s29 = sshll.u32 [#allocation4], 4
      %s30 = int_to_ptr.vmem [resolvable:$true] %s29
      %32 = dma.hbm_to_vmem [thread:$0]  %s1, 128, %s30, [#allocation5]
    $region9: #{tpu_custom_call.1} parent=1 // pred_fallthru
      _
    // Predicated region
    $region10: #{tpu_custom_call.1} parent=1 // pred_check
      _
    $region11: #{tpu_custom_call.1} parent=1 // pred_check_branch
      %34 = sbr.rel (0) target = $region13
    $region12: #{tpu_custom_call.1} parent=1 // pred_region
      %35 = dma.done [#allocation3], 256
    $region13: #{tpu_custom_call.1} parent=1 // pred_fallthru
      _
    // Predicated region
    $region14: #{tpu_custom_call.1} parent=1 // pred_check
      _
    $region15: #{tpu_custom_call.1} parent=1 // pred_check_branch
      %37 = sbr.rel (0) target = $region17
    $region16: #{tpu_custom_call.1} parent=1 // pred_region
      %38 = dma.done [#allocation5], 128
    $region17: #{tpu_custom_call.1} parent=1 // pred_fallthru
      _
    %p39 = scmp.eq.s32.totalorder 0, 0
    // Predicated region
    $region18: #{tpu_custom_call.1} parent=1 // pred_check
      %p40 = pneg %p39
    $region19: #{tpu_custom_call.1} parent=1 // pred_check_branch
      %42 = sbr.rel (%p40) target = $region21
    $region20: #{tpu_custom_call.1} parent=1 // pred_region
      %vm43 = vcmask 7168
      %44 = vst.msk [vmem:[%s2] sm:$0xff] %vm43, 0.0
      %45 = vst.msk [vmem:[%s3] sm:$0xff] %vm43, 0.0
    $region21: #{tpu_custom_call.1} parent=1 // pred_fallthru
      _
    %v46 = vld [vmem:[#allocation4] sm:$0xff]
    %v47 = vld [vmem:[#allocation2] sm:$0xff]
    %vm48 = vcmask 64512
    %v50 = vsel %vm48, %v46, 0
    %52 = vmatprep.subr.mxu0 0.0
    %53 = vmatpush1.msra.mxu0 0.0
    %54 = vmatprep.subr.mxu0 0.0
    %55 = vmatpush1.msra.mxu0 0.0
    %56 = vmatprep.subr.mxu0 0.0
    %57 = vmatpush1.msra.mxu0 0.0
    %58 = vmatprep.subr.mxu0 0.0
    %59 = vmatpush1.msra.mxu0 0.0
    %60 = vmatprep.subr.mxu0 0.0
    %61 = vmatpush1.msra.mxu0 0.0
    %62 = vmatprep.subr.mxu0 0.0
    %63 = vmatpush1.msra.mxu0 0.0
    %64 = vmatprep.subr.mxu0 0.0
    %65 = vmatpush1.msra.mxu0 0.0
    %66 = vmatprep.subr.mxu0 0.0
    %67 = vmatpush1.msra.mxu0 0.0
    %68 = vmatprep.subr.mxu0 0.0
    %69 = vmatpush1.msra.mxu0 0.0
    %70 = vmatprep.subr.mxu0 0.0
    %71 = vmatpush1.msra.mxu0 0.0
    %72 = vmatprep.subr.mxu0 0.0
    %73 = vmatpush1.msra.mxu0 0.0
    %74 = vmatprep.subr.mxu0 0.0
    %75 = vmatpush1.msra.mxu0 0.0
    %76 = vmatprep.subr.mxu0 0.0
    %77 = vmatpush1.msra.mxu0 0.0
    %78 = vmatprep.subr.mxu0 0.0
    %79 = vmatpush1.msra.mxu0 0.0
    %80 = vmatprep.subr.mxu0 0.0
    %81 = vmatpush1.msra.mxu0 0.0
    %82 = vmatprep.subr.mxu0 0.0
    %83 = vmatpush1.msra.mxu0 %v47
    %84 = vmatprep.subr.mxu0 0.0
    %85 = vmatpush2.msra.mxu0 0.0
    %86 = vmatprep.subr.mxu0 0.0
    %87 = vmatpush2.msra.mxu0 0.0
    %88 = vmatprep.subr.mxu0 0.0
    %89 = vmatpush2.msra.mxu0 0.0
    %90 = vmatprep.subr.mxu0 0.0
    %91 = vmatpush2.msra.mxu0 0.0
    %92 = vmatprep.subr.mxu0 0.0
    %93 = vmatpush2.msra.mxu0 0.0
    %94 = vmatprep.subr.mxu0 0.0
    %95 = vmatpush2.msra.mxu0 0.0
    %96 = vmatprep.subr.mxu0 0.0
    %97 = vmatpush2.msra.mxu0 0.0
    %98 = vmatprep.subr.mxu0 0.0
    %99 = vmatpush2.msra.mxu0 0.0
    %100 = vmatprep.subr.mxu0 0.0
    %101 = vmatpush2.msra.mxu0 0.0
    %102 = vmatprep.subr.mxu0 0.0
    %103 = vmatpush2.msra.mxu0 0.0
    %104 = vmatprep.subr.mxu0 0.0
    %105 = vmatpush2.msra.mxu0 0.0
    %106 = vmatprep.subr.mxu0 0.0
    %107 = vmatpush2.msra.mxu0 0.0
    %108 = vmatprep.subr.mxu0 0.0
    %109 = vmatpush2.msra.mxu0 0.0
    %110 = vmatprep.subr.mxu0 0.0
    %111 = vmatpush2.msra.mxu0 0.0
    %112 = vmatprep.subr.mxu0 0.0
    %113 = vmatpush2.msra.mxu0 0.0
    %114 = vmatprep.subr.mxu0 0.0
    %115 = vmatpush2.msra.mxu0 0.0
    %116 = vmatprep.mubr.f32.mxu0 0.0
    %117 = vmatmul.mubr.f32.gmra.mxu0 %v50
    %v118 = vpop.f32.mrf.mxu0
    %v119 = vadd.f32 0.0, %v118
    %v120 = vpop.f32.mrf.mxu0
    %121 = vdwg.mxu0
    %vm122 = vcmask 523264
    %v123 = vsel %vm122, %v119, 0.0
    %124 = vadd.xlane.f32.xlu0 %v123
    %v125 = vpop.xlane.xlu0 %124
    %v126 = vadd.f32 %v125, 0.0
    %v127 = vmul.f32 %v119, %v119
    %v128 = vsel %vm122, %v127, 0.0
    %129 = vadd.xlane.f32.xlu0 %v128
    %v130 = vpop.xlane.xlu0 %129
    %v131 = vadd.f32 %v130, 0.0
    %s132 = scalar_lea.vmem [#allocation2], 8
    %v133 = vld [vmem:[%s132] sm:$0xff]
    %134 = vmatprep.subr.mxu0 0.0
    %135 = vmatpush1.msra.mxu0 0.0
    %136 = vmatprep.subr.mxu0 0.0
    %137 = vmatpush1.msra.mxu0 0.0
    %138 = vmatprep.subr.mxu0 0.0
    %139 = vmatpush1.msra.mxu0 0.0
    %140 = vmatprep.subr.mxu0 0.0
    %141 = vmatpush1.msra.mxu0 0.0
    %142 = vmatprep.subr.mxu0 0.0
    %143 = vmatpush1.msra.mxu0 0.0
    %144 = vmatprep.subr.mxu0 0.0
    %145 = vmatpush1.msra.mxu0 0.0
    %146 = vmatprep.subr.mxu0 0.0
    %147 = vmatpush1.msra.mxu0 0.0
    %148 = vmatprep.subr.mxu0 0.0
    %149 = vmatpush1.msra.mxu0 0.0
    %150 = vmatprep.subr.mxu0 0.0
    %151 = vmatpush1.msra.mxu0 0.0
    %152 = vmatprep.subr.mxu0 0.0
    %153 = vmatpush1.msra.mxu0 0.0
    %154 = vmatprep.subr.mxu0 0.0
    %155 = vmatpush1.msra.mxu0 0.0
    %156 = vmatprep.subr.mxu0 0.0
    %157 = vmatpush1.msra.mxu0 0.0
    %158 = vmatprep.subr.mxu0 0.0
    %159 = vmatpush1.msra.mxu0 0.0
    %160 = vmatprep.subr.mxu0 0.0
    %161 = vmatpush1.msra.mxu0 0.0
    %162 = vmatprep.subr.mxu0 0.0
    %163 = vmatpush1.msra.mxu0 0.0
    %164 = vmatprep.subr.mxu0 0.0
    %165 = vmatpush1.msra.mxu0 %v133
    %166 = vmatprep.subr.mxu0 0.0
    %167 = vmatpush2.msra.mxu0 0.0
    %168 = vmatprep.subr.mxu0 0.0
    %169 = vmatpush2.msra.mxu0 0.0
    %170 = vmatprep.subr.mxu0 0.0
    %171 = vmatpush2.msra.mxu0 0.0
    %172 = vmatprep.subr.mxu0 0.0
    %173 = vmatpush2.msra.mxu0 0.0
    %174 = vmatprep.subr.mxu0 0.0
    %175 = vmatpush2.msra.mxu0 0.0
    %176 = vmatprep.subr.mxu0 0.0
    %177 = vmatpush2.msra.mxu0 0.0
    %178 = vmatprep.subr.mxu0 0.0
    %179 = vmatpush2.msra.mxu0 0.0
    %180 = vmatprep.subr.mxu0 0.0
    %181 = vmatpush2.msra.mxu0 0.0
    %182 = vmatprep.subr.mxu0 0.0
    %183 = vmatpush2.msra.mxu0 0.0
    %184 = vmatprep.subr.mxu0 0.0
    %185 = vmatpush2.msra.mxu0 0.0
    %186 = vmatprep.subr.mxu0 0.0
    %187 = vmatpush2.msra.mxu0 0.0
    %188 = vmatprep.subr.mxu0 0.0
    %189 = vmatpush2.msra.mxu0 0.0
    %190 = vmatprep.subr.mxu0 0.0
    %191 = vmatpush2.msra.mxu0 0.0
    %192 = vmatprep.subr.mxu0 0.0
    %193 = vmatpush2.msra.mxu0 0.0
    %194 = vmatprep.subr.mxu0 0.0
    %195 = vmatpush2.msra.mxu0 0.0
    %196 = vmatprep.subr.mxu0 0.0
    %197 = vmatpush2.msra.mxu0 0.0
    %198 = vmatprep.mubr.f32.mxu0 0.0
    %199 = vmatmul.mubr.f32.gmra.mxu0 %v50
    %v200 = vpop.f32.mrf.mxu0
    %v201 = vadd.f32 0.0, %v200
    %v202 = vpop.f32.mrf.mxu0
    %203 = vdwg.mxu0
    %v204 = vsel %vm122, %v201, 0.0
    %205 = vadd.xlane.f32.xlu0 %v204
    %v206 = vpop.xlane.xlu0 %205
    %v207 = vadd.f32 %v126, %v206
    %v208 = vmul.f32 %v201, %v201
    %v209 = vsel %vm122, %v208, 0.0
    %210 = vadd.xlane.f32.xlu0 %v209
    %v211 = vpop.xlane.xlu0 %210
    %v212 = vadd.f32 %v131, %v211
    %v213 = vld [vmem:[%s2] sm:$0xff]
    %v214 = vadd.f32 %v213, %v207
    %vm215 = vcmask 7168
    %216 = vst.msk [vmem:[%s2] sm:$0xff] %vm215, %v214
    %v217 = vld [vmem:[%s3] sm:$0xff]
    %v218 = vadd.f32 %v217, %v212
    %219 = vst.msk [vmem:[%s3] sm:$0xff] %vm215, %v218
    // Predicated region
    $region22: #{tpu_custom_call.1} parent=1 // pred_check
      _
    $region23: #{tpu_custom_call.1} parent=1 // pred_check_branch
      %221 = sbr.rel (0) target = $region25
    $region24: #{tpu_custom_call.1} parent=1 // pred_region
      _
    $region25: #{tpu_custom_call.1} parent=1 // pred_fallthru
      _
    // Predicated region
    $region26: #{tpu_custom_call.1} parent=1 // pred_check
      _
    $region27: #{tpu_custom_call.1} parent=1 // pred_check_branch
      %223 = sbr.rel (0) target = $region29
    $region28: #{tpu_custom_call.1} parent=1 // pred_region
      _
    $region29: #{tpu_custom_call.1} parent=1 // pred_fallthru
      _
    // Predicated region
    $region30: #{tpu_custom_call.1} parent=1 // pred_check
      _
    $region31: #{tpu_custom_call.1} parent=1 // pred_check_branch
      %225 = sbr.rel (0) target = $region33
    $region32: #{tpu_custom_call.1} parent=1 // pred_region
      _
    $region33: #{tpu_custom_call.1} parent=1 // pred_fallthru
      _
    // Predicated region
    $region34: #{tpu_custom_call.1} parent=1 // pred_check
      _
    $region35: #{tpu_custom_call.1} parent=1 // pred_check_branch
      %227 = sbr.rel (0) target = $region37
    $region36: #{tpu_custom_call.1} parent=1 // pred_region
      _
    $region37: #{tpu_custom_call.1} parent=1 // pred_fallthru
      _
    %228 = vsyncpa [#allocation3], 1
    %229 = vsyncpa [#allocation5], 1

</llo_original>
